<compile_context>
chip_gen: v6e
topology: v6e:2x2x1
jax: 0.10.0
libtpu: 0.0.40
codegen_flags: <defaults>
</compile_context>

<pallas_src>
import jax
import jax.numpy as jnp
import numpy as np
from jax import lax
from jax.experimental import pallas as pl
from jax.experimental.pallas import tpu as pltpu

Z_DIM = 10
HIDDEN = 32
IMG_SHAPE = (1, 16, 16)                  # (C, H, W)
D_IN = IMG_SHAPE[0] * IMG_SHAPE[1] * IMG_SHAPE[2]
N_EXP = 263                              # self.n_exp buffer
N_PAD = 384                              # N_EXP padded to a lane multiple (3 * 128)
TEMP = 1.0                               # self.temp buffer (> 0)
INV_TEMP = 1.0 / TEMP
CLAMP = 5.3
EPS = float(jnp.finfo(jnp.float32).eps)
BLOCK_B = 128                            # batch rows per grid step (fits VMEM on v5e/v6e/v7x)
_SCAN_SHIFTS = (1, 2, 4, 8, 16, 32, 64, 128, 256)   # Hillis-Steele steps, covers 384 lanes


def _softclamp_upper(x, upper):
    # TODO(synk): exact softclamp_upper definition was not provided with the module;
    # this is a smooth upper clamp (identity well below `upper`, saturates at `upper`).
    return upper - jax.nn.softplus(upper - x)


def _softclamp(x, upper, lower):
    # TODO(synk): exact softclamp definition was not provided; smooth two-sided clamp
    # (~identity inside [lower, upper], saturates at the bounds).
    return lower + jax.nn.softplus(x - lower) - jax.nn.softplus(x - upper)


# ----------------------------------------------------------------------------------
# pltpu.roll rotation-convention probe (run once, outside jit). Guarantees the prefix
# sum uses "result[i] = x[i - shift]" (np.roll) semantics regardless of JAX version.
# ----------------------------------------------------------------------------------
_ROLL_MATCHES_NUMPY = None


def _probe_roll_direction():
    global _ROLL_MATCHES_NUMPY
    if _ROLL_MATCHES_NUMPY is None:
        def _k(x_ref, o_ref):
            o_ref[...] = pltpu.roll(x_ref[...], 1, axis=1)

        x = lax.broadcasted_iota(jnp.float32, (8, 128), 1)
        out = pl.pallas_call(
            _k, out_shape=jax.ShapeDtypeStruct((8, 128), jnp.float32))(x)
        _ROLL_MATCHES_NUMPY = bool(np.asarray(out)[0, 1] == 0.0)
    return _ROLL_MATCHES_NUMPY


def _roll_amount(shift):
    """Amount to pass to pltpu.roll so the result equals np.roll(x, shift, axis=-1)."""
    matches = True if _ROLL_MATCHES_NUMPY is None else _ROLL_MATCHES_NUMPY
    return shift if matches else (N_PAD - shift)


# ----------------------------------------------------------------------------------
# Kernel
# ----------------------------------------------------------------------------------
def _poisson_vae_kernel(x_ref, w1_ref, b1_ref, w2_ref, b2_ref, logr_ref, u_ref,
                        w3_ref, b3_ref, w4_ref, b4_ref, xhat_ref, logdr_ref):
    f32 = jnp.float32
    tb = x_ref.shape[0]

    # ---------------- encoder (MLP): Linear -> ReLU -> Linear ----------------
    h1 = jnp.dot(x_ref[...], w1_ref[...], preferred_element_type=f32) + b1_ref[...]
    h1 = jnp.maximum(h1, 0.0)
    log_dr = jnp.dot(h1, w2_ref[...], preferred_element_type=f32) + b2_ref[...]

    # infer(): exc_only=True branch
    log_dr = _softclamp(log_dr, 10.0, 0.0)
    logdr_ref[...] = log_dr

    # ---------------- Poisson rates ----------------
    log_rates = _softclamp_upper(logr_ref[...] + log_dr, CLAMP)
    rates = jnp.exp(log_rates) + EPS                         # (tb, Z)
    inv_rates = pl.reciprocal(rates, approx=True)            # EUP reciprocal

    # Hoisted iotas (JAX does not CSE broadcast_in_dim -- build once).
    z_iota = lax.broadcasted_iota(jnp.int32, (tb, Z_DIM), 1)
    lane_iota = lax.broadcasted_iota(jnp.int32, (tb, N_PAD), 1)
    valid_lane = lane_iota < N_EXP

    # ---------------- reparameterised Poisson sample ----------------
    # One lane-dense (tb, N_PAD) slab per latent dim z (static 10-way unroll).
    z_acc = jnp.zeros((tb, Z_DIM), f32)
    for z in range(Z_DIM):
        # column z of 1/rates as a (tb, 1) vector (keepdims reduction; no reshapes)
        inv_z = jnp.sum(jnp.where(z_iota == z, inv_rates, 0.0),
                        axis=1, keepdims=True)
        u_z = u_ref[:, z * N_PAD:(z + 1) * N_PAD]            # (tb, N_PAD), lane-aligned
        x_exp = -jnp.log1p(-u_z) * inv_z                     # Exponential(rate), inverse CDF
        # inclusive prefix sum over the n_exp (lane) axis: Hillis-Steele scan
        times = x_exp
        for s in _SCAN_SHIFTS:
            shifted = pltpu.roll(times, _roll_amount(s), axis=1)
            times = times + jnp.where(lane_iota >= s, shifted, 0.0)
        # temp > 0 branch: z = sum_k sigmoid((1 - t_k) / temp); pad lanes masked out
        sig = jax.nn.sigmoid((1.0 - times) * INV_TEMP)
        z_col = jnp.sum(jnp.where(valid_lane, sig, 0.0), axis=1, keepdims=True)
        z_acc = z_acc + jnp.where(z_iota == z, z_col, 0.0)

    # ---------------- decoder (MLP): Linear -> ReLU -> Linear ----------------
    h2 = jnp.dot(z_acc, w3_ref[...], preferred_element_type=f32) + b3_ref[...]
    h2 = jnp.maximum(h2, 0.0)
    xhat_ref[...] = jnp.dot(h2, w4_ref[...], preferred_element_type=f32) + b4_ref[...]


# ----------------------------------------------------------------------------------
# Wrapper
# ----------------------------------------------------------------------------------
def _build_specs(tb):
    def const(shape):
        return pl.BlockSpec(shape, lambda i: (0, 0))

    in_specs = [
        pl.BlockSpec((tb, D_IN), lambda i: (i, 0)),            # x
        const((D_IN, HIDDEN)), const((1, HIDDEN)),             # w1, b1
        const((HIDDEN, Z_DIM)), const((1, Z_DIM)),             # w2, b2
        const((1, Z_DIM)),                                     # log_r
        pl.BlockSpec((tb, Z_DIM * N_PAD), lambda i: (i, 0)),   # u (lane-dense n_exp)
        const((Z_DIM, HIDDEN)), const((1, HIDDEN)),            # w3, b3
        const((HIDDEN, D_IN)), const((1, D_IN)),               # w4, b4
    ]
    out_specs = (pl.BlockSpec((tb, D_IN), lambda i: (i, 0)),
                 pl.BlockSpec((tb, Z_DIM), lambda i: (i, 0)))
    return in_specs, out_specs


@jax.jit
def _poisson_vae_forward_jit(x, params, u):
    b = x.shape[0]
    x_flat = x.reshape(b, -1).astype(jnp.float32)

    # u: (N_EXP, B, Z) -> (B, Z, N_EXP) keeps the per-(b, z) draw order on the lane axis,
    # pad the draw axis with zeros (-log1p(-0) = 0 -> no effect on the prefix sum).
    u_t = jnp.transpose(u.astype(jnp.float32), (1, 2, 0))
    u_t = jnp.pad(u_t, ((0, 0), (0, 0), (0, N_PAD - N_EXP)))
    u2 = u_t.reshape(b, Z_DIM * N_PAD)

    tb = min(BLOCK_B, b)
    b_pad = pl.cdiv(b, tb) * tb
    if b_pad != b:
        x_flat = jnp.pad(x_flat, ((0, b_pad - b), (0, 0)))
        u2 = jnp.pad(u2, ((0, b_pad - b), (0, 0)))

    in_specs, out_specs = _build_specs(tb)
    cost = pl.CostEstimate(
        flops=2 * b_pad * (D_IN * HIDDEN + HIDDEN * Z_DIM
                           + Z_DIM * HIDDEN + HIDDEN * D_IN)
              + b_pad * Z_DIM * N_PAD * 24,
        transcendentals=b_pad * Z_DIM * (2 * N_PAD + 8),
        bytes_accessed=4 * (b_pad * (2 * D_IN + Z_DIM * N_PAD + 2 * Z_DIM)
                            + 2 * (D_IN * HIDDEN + HIDDEN * Z_DIM + HIDDEN + D_IN + Z_DIM)),
    )

    xhat_flat, log_dr = pl.pallas_call(
        _poisson_vae_kernel,
        out_shape=(jax.ShapeDtypeStruct((b_pad, D_IN), jnp.float32),
                   jax.ShapeDtypeStruct((b_pad, Z_DIM), jnp.float32)),
        grid_spec=pltpu.PrefetchScalarGridSpec(
            num_scalar_prefetch=0,
            grid=(b_pad // tb,),
            in_specs=in_specs,
            out_specs=out_specs),
        compiler_params=pltpu.CompilerParams(dimension_semantics=("parallel",)),
        cost_estimate=cost,
    )(x_flat,
      params["w1"], params["b1"], params["w2"], params["b2"],
      params["log_r"], u2,
      params["w3"], params["b3"], params["w4"], params["b4"])

    x_hat = xhat_flat[:b].reshape(x.shape)
    return x_hat, log_dr[:b]


def poisson_vae_forward(x, params, u):
    """x: (B, C, H, W) float32; u: (N_EXP, B, Z_DIM) uniforms in [0, 1).

    Returns (x_hat, log_dr)."""
    _probe_roll_direction()
    return _poisson_vae_forward_jit(x, params, u)


def init_params(key):
    """Deterministic parameter init matching the module shapes (MLP enc/dec, z_dim=10)."""
    ks = jax.random.split(key, 5)

    def linear(k, fan_in, fan_out):
        bound = 1.0 / (fan_in ** 0.5)
        kw, kb = jax.random.split(k)
        w = jax.random.uniform(kw, (fan_in, fan_out), jnp.float32, -bound, bound)
        bias = jax.random.uniform(kb, (1, fan_out), jnp.float32, -bound, bound)
        return w, bias

    w1, b1 = linear(ks[0], D_IN, HIDDEN)     # encoder layer 1
    w2, b2 = linear(ks[1], HIDDEN, Z_DIM)    # encoder layer 2 -> log_dr
    w3, b3 = linear(ks[2], Z_DIM, HIDDEN)    # decoder layer 1
    w4, b4 = linear(ks[3], HIDDEN, D_IN)     # decoder layer 2 -> x_hat

    # self.log_r = nn.Parameter(torch.rand(z_dim) * 4.0 - 6.0)
    log_r = jax.random.uniform(ks[4], (1, Z_DIM), jnp.float32) * 4.0 - 6.0

    return dict(w1=w1, b1=b1, w2=w2, b2=b2, w3=w3, b3=b3, w4=w4, b4=b4, log_r=log_r)


if __name__ == "__main__":
    key = jax.random.PRNGKey(0)
    k_params, k_x, k_u = jax.random.split(key, 3)

    params = init_params(k_params)
    batch = 2
    x = jax.random.normal(k_x, (batch,) + IMG_SHAPE, jnp.float32)
    # Uniforms driving the Exponential rsample (torch.distributions.Exponential.rsample)
    u = jax.random.uniform(k_u, (N_EXP, batch, Z_DIM), jnp.float32)

    x_hat, log_dr = poisson_vae_forward(x, params, u)
    jax.block_until_ready((x_hat, log_dr))

    assert x_hat.shape == x.shape, x_hat.shape
    assert log_dr.shape == (batch, Z_DIM), log_dr.shape
    assert bool(jnp.all(jnp.isfinite(x_hat))) and bool(jnp.all(jnp.isfinite(log_dr)))
    print("KERNEL_OK")
</pallas_src>

<mosaic_0001>
module attributes {stable_mosaic.version = 11 : i64} {
  func.func @_k(%arg0: memref<8x128xf32, #tpu.memory_space<vmem>>, %arg1: memref<8x128xf32, #tpu.memory_space<vmem>>) attributes {dimension_semantics = [], scalar_prefetch = 0 : i64, scratch_operands = 0 : i64, tpu.core_type = #tpu.core_type<tc>} {
    %c0 = arith.constant 0 : index
    %c0_0 = arith.constant 0 : index
    %0 = vector.load %arg0[%c0, %c0_0] : memref<8x128xf32, #tpu.memory_space<vmem>>, vector<8x128xf32>
    %c1_i32 = arith.constant 1 : i32
    %1 = tpu.dynamic_rotate %0 by %c1_i32 dim 1 : vector<8x128xf32>, i32 -> vector<8x128xf32>
    %c0_1 = arith.constant 0 : index
    %c0_2 = arith.constant 0 : index
    %2 = vector.load %arg1[%c0_1, %c0_2] : memref<8x128xf32, #tpu.memory_space<vmem>>, vector<8x128xf32>
    tpu.vector_store %arg1[%c0_1, %c0_2], %1 {strides = array<i32>} : memref<8x128xf32, #tpu.memory_space<vmem>>, vector<8x128xf32>,
    return
  }
}

</mosaic_0001>

<llo_original>
// kernel: tpu_custom_call.1
$region0: #{tpu_custom_call.1}
  #allocation0 [shape = 'u32[]', space=smem, size = 0x4, offset = 0x4, fixed_abs, tag = 'smem constant byte address 0x4 - core index']
  #allocation1 [shape = 'u32[144,128]{1,0:T(1,128)}', space=vmem, size = 0x12000, scoped, tag = 'internal scratch']
  %s0 = inlined_call_operand.hbm [shape: f32[8,128], index: 0, kind: input, shape index: {}]
  %s1 = inlined_call_operand.hbm [shape: f32[8,128], index: 1, kind: output, shape index: {}]
  %s2 = sld [smem:[#allocation0]]
  $region18: #{tpu_custom_call.1} parent=0
    _
  %s4 = ssub.s32 1, %s2
  %s5 = scalar_select 0, %s4, %s2
  $region1: #{tpu_custom_call.1} parent=0
    #allocation2 [shape = 'u8[4096]{0}', space=vmem, size = 0x1000, scoped, tag = 'input window, operand 0, single buffered']
    #allocation3 [shape = 's32[1]{0}', space=sflag, size = 0x4, scoped, tag = 'scoped memory for tpu_custom_call.1']
    #allocation4 [shape = 's32[1]{0}', space=sflag, size = 0x4, scoped, tag = 'scoped memory for tpu_custom_call.1']
    #allocation5 [shape = 'u8[4096]{0}', space=vmem, size = 0x1000, scoped, tag = 'output window, operand 0, single buffered']
    %6 = vsyncpa [#allocation3], 0
    %7 = vsyncpa [#allocation4], 0
    // Predicated region
    $region2: #{tpu_custom_call.1} parent=1 // pred_check
      _
    $region3: #{tpu_custom_call.1} parent=1 // pred_check_branch
      %9 = sbr.rel (0) target = $region5
    $region4: #{tpu_custom_call.1} parent=1 // pred_region
      %s11 = ssub.s32 128, 128
      %12 = vsyncadd [#allocation3], %s11
      %s14 = sshll.u32 [#allocation2], 4
      %s15 = int_to_ptr.vmem [resolvable:$true] %s14
      %17 = dma.hbm_to_vmem [thread:$0]  %s0, 128, %s15, [#allocation3]
    $region5: #{tpu_custom_call.1} parent=1 // pred_fallthru
      _
    // Predicated region
    $region6: #{tpu_custom_call.1} parent=1 // pred_check
      _
    $region7: #{tpu_custom_call.1} parent=1 // pred_check_branch
      %19 = sbr.rel (0) target = $region9
    $region8: #{tpu_custom_call.1} parent=1 // pred_region
      %20 = dma.done [#allocation3], 128
    $region9: #{tpu_custom_call.1} parent=1 // pred_fallthru
      _
    %v21 = vld [vmem:[#allocation2] sm:$0xff]
    %22 = vrot.lane.b32.xlu0 %v21, 1
    %v23 = vpop.permute.xlu0 %22
    %24 = vst [vmem:[#allocation5] sm:$0xff] %v23
    // Predicated region
    $region10: #{tpu_custom_call.1} parent=1 // pred_check
      _
    $region11: #{tpu_custom_call.1} parent=1 // pred_check_branch
      %26 = sbr.rel (0) target = $region13
    $region12: #{tpu_custom_call.1} parent=1 // pred_region
      %s28 = ssub.s32 128, 128
      %29 = vsyncadd [#allocation4], %s28
      %s31 = sshll.u32 [#allocation5], 4
      %s32 = int_to_ptr.vmem [resolvable:$true] %s31
      %34 = dma.vmem_to_hbm [thread:$0]  %s32, 128, %s1, [#allocation4]
    $region13: #{tpu_custom_call.1} parent=1 // pred_fallthru
      _
    // Predicated region
    $region14: #{tpu_custom_call.1} parent=1 // pred_check
      _
    $region15: #{tpu_custom_call.1} parent=1 // pred_check_branch
      %36 = sbr.rel (0) target = $region17
    $region16: #{tpu_custom_call.1} parent=1 // pred_region
      %37 = dma.done [#allocation4], 128
    $region17: #{tpu_custom_call.1} parent=1 // pred_fallthru
      _
    %38 = vsyncpa [#allocation3], 1
    %39 = vsyncpa [#allocation4], 1

</llo_original>
